<compile_context>
chip_gen: v7x
topology: tpu7x:2x2x1
jax: 0.10.0
libtpu: 0.0.40
codegen_flags: <defaults>
</compile_context>

<pallas_src>
import functools

import jax
import jax.numpy as jnp
from jax.experimental import pallas as pl
from jax.experimental.pallas import tpu as pltpu


def _kd_loss_kernel(x_ref, t_ref, o_ref, *, inv_temp, scale, rows_in_last,
                    needs_mask):
    # One (tile_n, C) block of student / teacher logits; all math in f32.
    x = x_ref[...].astype(jnp.float32) * inv_temp
    t = t_ref[...].astype(jnp.float32) * inv_temp

    # Student log-sum-exp (log_p itself is never materialized).
    x_max = jnp.max(x, axis=1, keepdims=True)
    x_s = x - x_max
    x_lse = jnp.log(jnp.sum(jnp.exp(x_s), axis=1, keepdims=True))

    # Teacher un-normalized softmax; the per-element divide is hoisted to a
    # single per-row divide below.
    t_max = jnp.max(t, axis=1, keepdims=True)
    t_s = t - t_max
    t_exp = jnp.exp(t_s)
    t_sum = jnp.sum(t_exp, axis=1, keepdims=True)

    # Per-row KL: (1/S) * sum_c t_exp * (t_s - x_s) + x_lse - log S
    inner = jnp.sum(t_exp * (t_s - x_s), axis=1, keepdims=True)
    kl_row = inner / t_sum + x_lse - jnp.log(t_sum)          # (tile_n, 1)

    if not needs_mask:
        # N is a multiple of tile_n: no padded rows anywhere.
        o_ref[0, 0] = jnp.sum(kl_row) * scale
    else:
        last = pl.num_programs(0) - 1

        @pl.when(pl.program_id(0) != last)
        def _():
            # Full tiles skip the iota/compare/select entirely.
            o_ref[0, 0] = jnp.sum(kl_row) * scale

        @pl.when(pl.program_id(0) == last)
        def _():
            # Only the last tile has padded rows (stale VMEM -> possible
            # inf/NaN in kl_row); the elementwise select zeroes them before
            # the cross-row reduction.
            row_ids = jax.lax.broadcasted_iota(jnp.int32, kl_row.shape, 0)
            masked = jnp.where(row_ids < rows_in_last, kl_row, 0.0)
            o_ref[0, 0] = jnp.sum(masked) * scale


def _choose_tile_n(n, c, elem_bytes):
    """Dtype-aware batch-tile size.

    Per grid step VMEM  =  2 inputs x 2 pipeline buffers x block_bytes
                         + ~4 live (tile_n, C) f32 temporaries,
    kept under ~40 MiB so it fits the 48 MiB scoped budget requested below
    (safe on v7x's 64 MiB physical VMEM, ample headroom on v5e/v6e's 128 MiB).
    HBM blocks are capped at ~4 MiB (~86% of measured roofline; bigger only
    adds VMEM pressure) and rows at 2048.
    """
    c = max(1, c)
    vmem_budget = 40 * 1024 * 1024
    bytes_per_elem = 4 * elem_bytes + 4 * 4          # 4 input bufs + 4 f32 temps
    max_rows_vmem = vmem_budget // (bytes_per_elem * c)

    target_block_bytes = 4 * 1024 * 1024             # ~4 MiB HBM block
    rows_roofline = target_block_bytes // (elem_bytes * c)

    sublane = max(8, 32 // max(1, elem_bytes))        # 8 f32 / 16 bf16 / 32 int8
    tile = min(max_rows_vmem, rows_roofline, 2048)
    tile = max(sublane, (tile // sublane) * sublane)
    if n <= tile:
        return n                                      # single full-extent block
    return tile


def kd_loss(student_logits, teacher_logits, temp_factor, *, tile_n=None):
    """Pallas implementation of KDLoss.forward.

    Args:
      student_logits: (N, C) logits ("input" in the PyTorch module).
        Production path: pass bf16 — on HBM-bound v5e/v6e f32 inputs halve
        throughput; math is f32 inside the kernel either way.
      teacher_logits: (N, C) logits ("target" in the PyTorch module).
      temp_factor:    Python float temperature.
      tile_n:         optional batch-tile override (testing only).

    Returns:
      Scalar float32 loss.
    """
    assert student_logits.shape == teacher_logits.shape
    n, c = student_logits.shape
    elem_bytes = max(jnp.dtype(student_logits.dtype).itemsize,
                     jnp.dtype(teacher_logits.dtype).itemsize)
    if tile_n is None:
        tile_n = _choose_tile_n(n, c, elem_bytes)
    num_tiles = pl.cdiv(n, tile_n)
    rows_in_last = n - (num_tiles - 1) * tile_n
    needs_mask = rows_in_last != tile_n               # static: last tile padded?

    kernel = functools.partial(
        _kd_loss_kernel,
        inv_temp=1.0 / float(temp_factor),
        scale=float(temp_factor) ** 2 / float(n),
        rows_in_last=rows_in_last,
        needs_mask=needs_mask,
    )

    partials = pl.pallas_call(
        kernel,
        out_shape=jax.ShapeDtypeStruct((num_tiles, 1), jnp.float32),
        grid_spec=pltpu.PrefetchScalarGridSpec(
            num_scalar_prefetch=0,
            grid=(num_tiles,),
            in_specs=[
                pl.BlockSpec((tile_n, c), lambda i: (i, 0)),
                pl.BlockSpec((tile_n, c), lambda i: (i, 0)),
            ],
            # Scalar per-tile partial in SMEM: avoids the (8,128) VMEM tile
            # padding / masked stores of a (1,1) VMEM block.
            out_specs=pl.BlockSpec((1, 1), lambda i: (i, 0),
                                   memory_space=pltpu.MemorySpace.SMEM),
        ),
        compiler_params=pltpu.CompilerParams(
            dimension_semantics=("parallel",),
            vmem_limit_bytes=48 * 1024 * 1024,        # fits v7x's 64 MiB VMEM
        ),
    )(student_logits, teacher_logits)
    # Final reduction of independent per-tile partials in the wrapper.
    return jnp.sum(partials)


def kd_loss_ref(student_logits, teacher_logits, temp_factor):
    """Pure-JAX reference for verification."""
    x = student_logits.astype(jnp.float32) / temp_factor
    t = teacher_logits.astype(jnp.float32) / temp_factor
    log_p = jax.nn.log_softmax(x, axis=1)
    q = jax.nn.softmax(t, axis=1)
    log_q = jax.nn.log_softmax(t, axis=1)
    kl = jnp.sum(q * (log_q - log_p))
    return kl * temp_factor**2 / student_logits.shape[0]


if __name__ == "__main__":
    TEMP = 4.0
    key = jax.random.PRNGKey(0)
    k1, k2 = jax.random.split(key)

    # Case 1: small shape consistent with the module (single full-extent tile,
    # auto tile chooser, no mask).
    N, C = 8, 32
    student = jax.random.normal(k1, (N, C), dtype=jnp.float32)
    teacher = jax.random.normal(k2, (N, C), dtype=jnp.float32)
    loss = jax.block_until_ready(kd_loss(student, teacher, TEMP))
    ref = jax.block_until_ready(kd_loss_ref(student, teacher, TEMP))
    assert jnp.isfinite(loss), "loss is not finite"
    assert jnp.allclose(loss, ref, rtol=1e-5, atol=1e-5), (loss, ref)

    # Case 2: batch not a multiple of the tile -> exercises the batch grid,
    # per-tile SMEM partials, and the last-tile-only padded-row mask.
    k3, k4 = jax.random.split(k1)
    student2 = jax.random.normal(k3, (20, 256), dtype=jnp.float32)
    teacher2 = jax.random.normal(k4, (20, 256), dtype=jnp.float32)
    loss2 = jax.block_until_ready(kd_loss(student2, teacher2, TEMP, tile_n=8))
    ref2 = jax.block_until_ready(kd_loss_ref(student2, teacher2, TEMP))
    assert jnp.isfinite(loss2), "tiled loss is not finite"
    assert jnp.allclose(loss2, ref2, rtol=1e-5, atol=1e-5), (loss2, ref2)

    # Case 3: bf16 inputs (production path on bandwidth-bound v5e/v6e) with a
    # sublane-aligned (multiple of 16) bf16 tile and a padded last tile.
    loss3 = jax.block_until_ready(
        kd_loss(student2.astype(jnp.bfloat16),
                teacher2.astype(jnp.bfloat16), TEMP, tile_n=16))
    assert jnp.isfinite(loss3), "bf16 loss is not finite"
    assert jnp.allclose(loss3, ref2, rtol=1e-1, atol=5e-2), (loss3, ref2)

    print("KERNEL_OK")
</pallas_src>

<mosaic_0001>
module attributes {stable_mosaic.version = 11 : i64} {
  func.func @_kd_loss_kernel(%arg0: i32, %arg1: memref<8x32xf32, #tpu.memory_space<vmem>>, %arg2: memref<8x32xf32, #tpu.memory_space<vmem>>, %arg3: memref<1x1xf32, #tpu.memory_space<smem>>) attributes {dimension_semantics = [#tpu.dimension_semantics<parallel>], iteration_bounds = array<i64: 1>, scalar_prefetch = 0 : i64, scratch_operands = 0 : i64, tpu.core_type = #tpu.core_type<tc>, window_params = [{transform_indices = @transform_0, window_bounds = array<i64: 8, 32>}, {transform_indices = @transform_1, window_bounds = array<i64: 8, 32>}, {transform_indices = @transform_2, window_bounds = array<i64: 1, 1>}]} {
    %c0 = arith.constant 0 : index
    %c0_0 = arith.constant 0 : index
    %0 = vector.load %arg1[%c0, %c0_0] : memref<8x32xf32, #tpu.memory_space<vmem>>, vector<8x32xf32>
    %cst = arith.constant 2.500000e-01 : f32
    %1 = vector.broadcast %cst : f32 to vector<8x32xf32>
    %2 = arith.mulf %0, %1 : vector<8x32xf32>
    %c0_1 = arith.constant 0 : index
    %c0_2 = arith.constant 0 : index
    %3 = vector.load %arg2[%c0_1, %c0_2] : memref<8x32xf32, #tpu.memory_space<vmem>>, vector<8x32xf32>
    %cst_3 = arith.constant 2.500000e-01 : f32
    %4 = vector.broadcast %cst_3 : f32 to vector<8x32xf32>
    %5 = arith.mulf %3, %4 : vector<8x32xf32>
    %cst_4 = arith.constant dense<0xFF800000> : vector<8xf32>
    %6 = vector.multi_reduction <maximumf>, %2, %cst_4 [1] : vector<8x32xf32> to vector<8xf32>
    %7 = vector.shape_cast %6 : vector<8xf32> to vector<8x1xf32>
    %8 = vector.broadcast %7 : vector<8x1xf32> to vector<8x32xf32>
    %9 = arith.subf %2, %8 : vector<8x32xf32>
    %10 = math.exp %9 : vector<8x32xf32>
    %cst_5 = arith.constant dense<0.000000e+00> : vector<8xf32>
    %11 = vector.multi_reduction <add>, %10, %cst_5 [1] : vector<8x32xf32> to vector<8xf32>
    %12 = vector.shape_cast %11 : vector<8xf32> to vector<8x1xf32>
    %13 = math.log %12 : vector<8x1xf32>
    %cst_6 = arith.constant dense<0xFF800000> : vector<8xf32>
    %14 = vector.multi_reduction <maximumf>, %5, %cst_6 [1] : vector<8x32xf32> to vector<8xf32>
    %15 = vector.shape_cast %14 : vector<8xf32> to vector<8x1xf32>
    %16 = vector.broadcast %15 : vector<8x1xf32> to vector<8x32xf32>
    %17 = arith.subf %5, %16 : vector<8x32xf32>
    %18 = math.exp %17 : vector<8x32xf32>
    %cst_7 = arith.constant dense<0.000000e+00> : vector<8xf32>
    %19 = vector.multi_reduction <add>, %18, %cst_7 [1] : vector<8x32xf32> to vector<8xf32>
    %20 = vector.shape_cast %19 : vector<8xf32> to vector<8x1xf32>
    %21 = arith.subf %17, %9 : vector<8x32xf32>
    %22 = arith.mulf %18, %21 : vector<8x32xf32>
    %cst_8 = arith.constant dense<0.000000e+00> : vector<8xf32>
    %23 = vector.multi_reduction <add>, %22, %cst_8 [1] : vector<8x32xf32> to vector<8xf32>
    %24 = vector.shape_cast %23 : vector<8xf32> to vector<8x1xf32>
    %25 = arith.divf %24, %20 : vector<8x1xf32>
    %26 = arith.addf %25, %13 : vector<8x1xf32>
    %27 = math.log %20 : vector<8x1xf32>
    %28 = arith.subf %26, %27 : vector<8x1xf32>
    %29 = vector.shape_cast %28 : vector<8x1xf32> to vector<1x8x1xf32>
    %cst_9 = arith.constant dense<0.000000e+00> : vector<1xf32>
    %30 = vector.multi_reduction <add>, %29, %cst_9 [1, 2] : vector<1x8x1xf32> to vector<1xf32>
    %31 = vector.shape_cast %30 : vector<1xf32> to vector<1x1x1xf32>
    %32 = vector.extract %31[0, 0, 0] : f32 from vector<1x1x1xf32>
    %cst_10 = arith.constant 2.000000e+00 : f32
    %33 = arith.mulf %32, %cst_10 : f32
    %c0_11 = arith.constant 0 : index
    %c0_12 = arith.constant 0 : index
    %34 = memref.load %arg3[%c0_11, %c0_12] : memref<1x1xf32, #tpu.memory_space<smem>>
    memref.store %33, %arg3[%c0_11, %c0_12] : memref<1x1xf32, #tpu.memory_space<smem>>
    return
  }
  func.func @transform_0(%arg0: i32) -> (i32, i32) {
    %c0_i32 = arith.constant 0 : i32
    %c0_i32_0 = arith.constant 0 : i32
    return %arg0, %c0_i32 : i32, i32
  }
  func.func @transform_1(%arg0: i32) -> (i32, i32) {
    %c0_i32 = arith.constant 0 : i32
    %c0_i32_0 = arith.constant 0 : i32
    return %arg0, %c0_i32 : i32, i32
  }
  func.func @transform_2(%arg0: i32) -> (i32, i32) {
    %c0_i32 = arith.constant 0 : i32
    %c0_i32_0 = arith.constant 0 : i32
    return %arg0, %c0_i32 : i32, i32
  }
}

</mosaic_0001>

<llo_original>
// kernel: tpu_custom_call.1
$region0: #{tpu_custom_call.1}
  #allocation0 [shape = 'u32[]', space=smem, size = 0x4, offset = 0x4, fixed_abs, tag = 'smem constant byte address 0x4 - core index']
  #allocation1 [shape = 'u32[144,128]{1,0:T(1,128)}', space=vmem, size = 0x12000, scoped, tag = 'internal scratch']
  %s0 = inlined_call_operand.hbm [shape: f32[8,32], index: 0, kind: input, shape index: {}]
  %s1 = inlined_call_operand.hbm [shape: f32[8,32], index: 1, kind: input, shape index: {}]
  %s2 = inlined_call_operand.hbm [shape: f32[1,1], index: 2, kind: output, shape index: {}]
  %s3 = sld [smem:[#allocation0]]
  $region26: #{tpu_custom_call.1} parent=0
    _
  %s5 = ssub.s32 1, %s3
  %s6 = scalar_select 0, %s5, %s3
  $region1: #{tpu_custom_call.1} parent=0
    #allocation2 [shape = 'u8[4096]{0}', space=vmem, size = 0x1000, scoped, tag = 'input window, operand 0, single buffered']
    #allocation3 [shape = 's32[1]{0}', space=sflag, size = 0x4, scoped, tag = 'scoped memory for tpu_custom_call.1']
    #allocation4 [shape = 's32[1]{0}', space=sflag, size = 0x4, scoped, tag = 'scoped memory for tpu_custom_call.1']
    #allocation5 [shape = 'u8[4096]{0}', space=vmem, size = 0x1000, scoped, tag = 'input window, operand 1, single buffered']
    #allocation6 [shape = 's32[1]{0}', space=sflag, size = 0x4, scoped, tag = 'scoped memory for tpu_custom_call.1']
    #allocation7 [shape = 'u8[512]{0}', space=smem, size = 0x200, scoped, tag = 'output window, operand 0, single buffered']
    %7 = vsyncpa [#allocation3], 0
    %8 = vsyncpa [#allocation6], 0
    %9 = vsyncpa [#allocation4], 0
    // Predicated region
    $region2: #{tpu_custom_call.1} parent=1 // pred_check
      _
    $region3: #{tpu_custom_call.1} parent=1 // pred_check_branch
      %11 = sbr.rel (0) target = $region5
    $region4: #{tpu_custom_call.1} parent=1 // pred_region
      %s13 = ssub.s32 128, 128
      %14 = vsyncadd [#allocation3], %s13
      %s16 = sshll.u32 [#allocation2], 4
      %s17 = int_to_ptr.vmem [resolvable:$true] %s16
      %19 = dma.hbm_to_vmem [thread:$0]  %s0, 128, %s17, [#allocation3]
    $region5: #{tpu_custom_call.1} parent=1 // pred_fallthru
      _
    // Predicated region
    $region6: #{tpu_custom_call.1} parent=1 // pred_check
      _
    $region7: #{tpu_custom_call.1} parent=1 // pred_check_branch
      %21 = sbr.rel (0) target = $region9
    $region8: #{tpu_custom_call.1} parent=1 // pred_region
      %s23 = ssub.s32 128, 128
      %24 = vsyncadd [#allocation6], %s23
      %s26 = sshll.u32 [#allocation5], 4
      %s27 = int_to_ptr.vmem [resolvable:$true] %s26
      %29 = dma.hbm_to_vmem [thread:$0]  %s1, 128, %s27, [#allocation6]
    $region9: #{tpu_custom_call.1} parent=1 // pred_fallthru
      _
    // Predicated region
    $region10: #{tpu_custom_call.1} parent=1 // pred_check
      _
    $region11: #{tpu_custom_call.1} parent=1 // pred_check_branch
      %31 = sbr.rel (0) target = $region13
    $region12: #{tpu_custom_call.1} parent=1 // pred_region
      %32 = dma.done [#allocation3], 128
    $region13: #{tpu_custom_call.1} parent=1 // pred_fallthru
      _
    // Predicated region
    $region14: #{tpu_custom_call.1} parent=1 // pred_check
      _
    $region15: #{tpu_custom_call.1} parent=1 // pred_check_branch
      %34 = sbr.rel (0) target = $region17
    $region16: #{tpu_custom_call.1} parent=1 // pred_region
      %35 = dma.done [#allocation6], 128
    $region17: #{tpu_custom_call.1} parent=1 // pred_fallthru
      _
    %v36 = vld [vmem:[#allocation2] sm:$0xff]
    %v37 = vmul.f32 %v36, 0.25
    %v38 = vld [vmem:[#allocation5] sm:$0xff]
    %v39 = vmul.f32 %v38, 0.25
    %vm40 = vcmask 261120
    %v41 = vsel %vm40, %v37, -inf
    %42 = vmax.xlane.f32.xlu0 %v41
    %v43 = vpop.xlane.xlu0 %42
    %v44 = vsub.f32 %v37, %v43
    %v45 = vmul.f32 %v44, 1.442695
    %v46 = vpow.pop %v45
    %v47 = vsel %vm40, %v46, 0.0
    %48 = vadd.xlane.f32.xlu0 %v47
    %v49 = vpop.xlane.xlu0 %48
    %v50 = vlog2.pop %v49
    %v51 = vmul.f32 %v50, 0.6931472
    %v52 = vsel %vm40, %v39, -inf
    %53 = vmax.xlane.f32.xlu0 %v52
    %v54 = vpop.xlane.xlu0 %53
    %v55 = vsub.f32 %v39, %v54
    %v56 = vmul.f32 %v55, 1.442695
    %v57 = vpow.pop %v56
    %v58 = vsel %vm40, %v57, 0.0
    %59 = vadd.xlane.f32.xlu0 %v58
    %v60 = vpop.xlane.xlu0 %59
    %v61 = vsub.f32 %v55, %v44
    %v62 = vmul.f32 %v57, %v61
    %v63 = vsel %vm40, %v62, 0.0
    %64 = vadd.xlane.f32.xlu0 %v63
    %v65 = vpop.xlane.xlu0 %64
    %v66 = vrcp.pop %v60
    %v67 = vmul.f32 %v65, %v66
    %v68 = vadd.f32 %v67, %v51
    %v69 = vlog2.pop %v60
    %v70 = vmul.f32 %v69, 0.6931472
    %v71 = vsub.f32 %v68, %v70
    %vm72 = vcmask 7168
    %v73 = vsel %vm72, %v71, 0.0
    %74 = vadd.xlane.f32.xlu0 %v73
    %v75 = vpop.xlane.xlu0 %74
    %v76 = vrot.slane %v75, 4
    %v77 = vadd.f32 %v75, %v76
    %v78 = vrot.slane %v77, 2
    %v79 = vadd.f32 %v77, %v78
    %v80 = vrot.slane %v79, 1
    %v81 = vadd.f32 %v79, %v80
    %s82 = vtos %v81
    %s83 = smul.f32 %s82, 2.0
    %s84 = scalar_lea.smem [#allocation7], 0
    %85 = sst [smem:[%s84]] %s83
    // Predicated region
    $region18: #{tpu_custom_call.1} parent=1 // pred_check
      _
    $region19: #{tpu_custom_call.1} parent=1 // pred_check_branch
      %87 = sbr.rel (0) target = $region21
    $region20: #{tpu_custom_call.1} parent=1 // pred_region
      %s89 = ssub.s32 16, 16
      %90 = vsyncadd [#allocation4], %s89
      %93 = dma.smem_to_hbm [#allocation7], 16, %s2, [#allocation4]
    $region21: #{tpu_custom_call.1} parent=1 // pred_fallthru
      _
    // Predicated region
    $region22: #{tpu_custom_call.1} parent=1 // pred_check
      _
    $region23: #{tpu_custom_call.1} parent=1 // pred_check_branch
      %95 = sbr.rel (0) target = $region25
    $region24: #{tpu_custom_call.1} parent=1 // pred_region
      %96 = dma.done [#allocation4], 16
    $region25: #{tpu_custom_call.1} parent=1 // pred_fallthru
      _
    %97 = sfence
    %98 = vsyncpa [#allocation3], 1
    %99 = vsyncpa [#allocation6], 1
    %100 = vsyncpa [#allocation4], 1

</llo_original>
